<compile_context>
chip_gen: v5e
topology: v5e:2x2
jax: 0.10.0
libtpu: 0.0.40
codegen_flags: <defaults>
</compile_context>

<pallas_src>
import jax
import jax.numpy as jnp
from jax import lax
from jax.experimental import pallas as pl
from jax.experimental.pallas import tpu as pltpu

K = 3            # kernels = [3,3,3,3]
LEAKY_SLOPE = 0.01
BN_EPS = 1e-5


def _round_up(x, m):
    return (x + m - 1) // m * m


def _stats_kernel(p_ref, w_ref, sum_ref, sumsq_ref):
    """Pass 1: sub-pixel-folded conv matmul -> accumulate per-column sum / sumsq."""
    @pl.when(pl.program_id(0) == 0)
    def _():
        sum_ref[...] = jnp.zeros_like(sum_ref)
        sumsq_ref[...] = jnp.zeros_like(sumsq_ref)

    y = jnp.dot(p_ref[...], w_ref[...], preferred_element_type=jnp.float32)
    # zero-padded rows (M..M_pad) produce y == 0, so they add nothing to the stats.
    sum_ref[...] += jnp.sum(y, axis=0, keepdims=True)
    sumsq_ref[...] += jnp.sum(y * y, axis=0, keepdims=True)


def _apply_kernel(p_ref, w_ref, scale_ref, shift_ref, o_ref):
    """Pass 2: conv matmul -> fused BN affine (scale/shift) -> LeakyReLU."""
    y = jnp.dot(p_ref[...], w_ref[...], preferred_element_type=jnp.float32)
    y = y * scale_ref[...] + shift_ref[...]
    o_ref[...] = jnp.where(y >= 0, y, LEAKY_SLOPE * y).astype(o_ref.dtype)


def decoder_block_forward(x_nchw, w_cat, bias, gamma, beta, *,
                          block_m=512, matmul_dtype=jnp.float32):
    """x_nchw: (N, Cin, H, W) f32.
    w_cat: (Cin, Ctot, 3, 3) PyTorch ConvTranspose2d weights, branches concat on Cout.
    bias/gamma/beta: (Ctot,).  Returns (N, Ctot, 2H, 2W) f32."""
    N, Cin, H, W = x_nchw.shape
    Ctot = w_cat.shape[1]
    Ho, Wo = 2 * H, 2 * W

    Cin_p = _round_up(Cin, 8)          # sublane-friendly contraction blocks
    Ctot_p = _round_up(Ctot, 32)       # 4 * Ctot_p is a multiple of 128 -> lane-dense output
    C4 = 4 * Ctot_p
    Kc = 4 * Cin_p                     # folded contraction depth

    # ---- sub-pixel decomposition: 4 taps of the *un-dilated* input -----------------
    # out[n, c, 2a+ph, 2b+pw] only ever uses x[a,b], x[a,b+1], x[a+1,b], x[a+1,b+1].
    x_nhwc = jnp.transpose(x_nchw, (0, 2, 3, 1))
    xp = jnp.pad(x_nhwc, ((0, 0), (0, 1), (0, 1), (0, Cin_p - Cin)))
    M = N * H * W
    taps = [xp[:, 0:H, 0:W, :], xp[:, 0:H, 1:W + 1, :],
            xp[:, 1:H + 1, 0:W, :], xp[:, 1:H + 1, 1:W + 1, :]]
    patches = jnp.concatenate([t.reshape(M, Cin_p) for t in taps], axis=1)  # (M, 4*Cin_p)

    block_m = _round_up(min(block_m, _round_up(M, 8)), 8)
    M_pad = _round_up(M, block_m)
    if M_pad != M:
        patches = jnp.pad(patches, ((0, M_pad - M), (0, 0)))   # zero rows -> no stat impact
    patches = patches.astype(matmul_dtype)

    # ---- fold (parity x kernel-tap) into one (4*Cin_p, 4*Ctot_p) weight matrix ------
    def wk(kh, kw):
        ws = w_cat[:, :, kh, kw]                                 # (Cin, Ctot)
        return jnp.pad(ws, ((0, Cin_p - Cin), (0, Ctot_p - Ctot)))
    z = jnp.zeros((Cin_p, Ctot_p), w_cat.dtype)
    # column blocks = output parities (ph, pw) in order (0,0),(0,1),(1,0),(1,1);
    # row blocks    = taps x[a,b], x[a,b+1], x[a+1,b], x[a+1,b+1].
    col_ee = jnp.concatenate([wk(1, 1), z, z, z], axis=0)
    col_eo = jnp.concatenate([wk(1, 2), wk(1, 0), z, z], axis=0)
    col_oe = jnp.concatenate([wk(2, 1), z, wk(0, 1), z], axis=0)
    col_oo = jnp.concatenate([wk(2, 2), wk(2, 0), wk(0, 2), wk(0, 0)], axis=0)
    w_big = jnp.concatenate([col_ee, col_eo, col_oe, col_oo], axis=1).astype(matmul_dtype)

    grid_m = M_pad // block_m

    # ---- pass 1: BN statistics (global over all N*Ho*Wo rows, exact under tiling) ---
    sums, sumsq = pl.pallas_call(
        _stats_kernel,
        out_shape=(jax.ShapeDtypeStruct((1, C4), jnp.float32),
                   jax.ShapeDtypeStruct((1, C4), jnp.float32)),
        grid_spec=pltpu.PrefetchScalarGridSpec(
            num_scalar_prefetch=0, grid=(grid_m,),
            in_specs=[pl.BlockSpec((block_m, Kc), lambda i: (i, 0)),
                      pl.BlockSpec((Kc, C4), lambda i: (0, 0))],
            out_specs=(pl.BlockSpec((1, C4), lambda i: (0, 0)),
                       pl.BlockSpec((1, C4), lambda i: (0, 0)))),
        compiler_params=pltpu.CompilerParams(dimension_semantics=("arbitrary",)),
    )(patches, w_big)

    # ---- fold stats into per-channel scale/shift (tiny, done in plain XLA) ----------
    # NOTE: the ConvTranspose bias shifts the activation and its batch mean equally, so
    # it cancels out of training-mode BatchNorm; `bias` is accepted for API parity only.
    # TODO(synk): BatchNorm2d running_mean/running_var buffer updates are not modeled.
    count = jnp.float32(4 * M)                                   # = N * Ho * Wo
    sum_c = jnp.sum(sums.reshape(4, Ctot_p), axis=0)             # combine parity blocks
    sumsq_c = jnp.sum(sumsq.reshape(4, Ctot_p), axis=0)
    mean = sum_c / count
    var = jnp.maximum(sumsq_c / count - mean * mean, 0.0)        # biased (training-mode) var
    inv = lax.rsqrt(var + BN_EPS)
    gamma_p = jnp.pad(gamma.astype(jnp.float32), (0, Ctot_p - Ctot))  # pad gamma with 0
    beta_p = jnp.pad(beta.astype(jnp.float32), (0, Ctot_p - Ctot))
    scale_c = gamma_p * inv
    shift_c = beta_p - mean * scale_c
    scale_big = jnp.tile(scale_c, 4).reshape(1, C4)
    shift_big = jnp.tile(shift_c, 4).reshape(1, C4)

    # ---- pass 2: conv -> BN affine -> LeakyReLU, tiled over M, megacore-parallel ----
    y_flat = pl.pallas_call(
        _apply_kernel,
        out_shape=jax.ShapeDtypeStruct((M_pad, C4), jnp.float32),
        grid_spec=pltpu.PrefetchScalarGridSpec(
            num_scalar_prefetch=0, grid=(grid_m,),
            in_specs=[pl.BlockSpec((block_m, Kc), lambda i: (i, 0)),
                      pl.BlockSpec((Kc, C4), lambda i: (0, 0)),
                      pl.BlockSpec((1, C4), lambda i: (0, 0)),
                      pl.BlockSpec((1, C4), lambda i: (0, 0))],
            out_specs=pl.BlockSpec((block_m, C4), lambda i: (i, 0))),
        compiler_params=pltpu.CompilerParams(dimension_semantics=("parallel",)),
    )(patches, w_big, scale_big, shift_big)

    # ---- un-fold parities: (M, 4*Ctot_p) -> (N, Ctot, 2H, 2W) -----------------------
    y6 = y_flat[:M].reshape(N, H, W, 2, 2, Ctot_p)[..., :Ctot]   # (n, a, b, ph, pw, c)
    y = jnp.transpose(y6, (0, 5, 1, 3, 2, 4)).reshape(N, Ctot, Ho, Wo)
    return y


def reference_forward(x_nchw, w_cat, bias, gamma, beta):
    """Pure-JAX reference (independent path via lax.conv_general_dilated)."""
    w_flip = jnp.flip(w_cat, axis=(2, 3))                  # (Cin, Ctot, 3, 3)
    w_oihw = jnp.transpose(w_flip, (1, 0, 2, 3))           # (Ctot, Cin, 3, 3)
    y = lax.conv_general_dilated(
        x_nchw, w_oihw, window_strides=(1, 1),
        padding=[(1, 2), (1, 2)], lhs_dilation=(2, 2),
        dimension_numbers=('NCHW', 'OIHW', 'NCHW'))
    y = y + bias.reshape(1, -1, 1, 1)
    mean = jnp.mean(y, axis=(0, 2, 3), keepdims=True)
    var = jnp.mean((y - mean) ** 2, axis=(0, 2, 3), keepdims=True)
    yn = (y - mean) / jnp.sqrt(var + BN_EPS)
    yn = yn * gamma.reshape(1, -1, 1, 1) + beta.reshape(1, -1, 1, 1)
    return jnp.where(yn >= 0, yn, LEAKY_SLOPE * yn)


if __name__ == "__main__":
    key = jax.random.PRNGKey(0)
    N, Cin, H, W = 2, 4, 16, 16
    out_channels = [8, 8, 8, 8]            # OutChannels for the 4 branches
    Ctot = sum(out_channels)

    k1, k2, k3, k4, k5 = jax.random.split(key, 5)
    x = jax.random.normal(k1, (N, Cin, H, W), jnp.float32)
    # ConvTranspose2d weight per branch is (Cin, Cout_i, 3, 3); concat branches on Cout.
    w_cat = 0.1 * jax.random.normal(k2, (Cin, Ctot, 3, 3), jnp.float32)
    bias = 0.1 * jax.random.normal(k3, (Ctot,), jnp.float32)
    gamma = 1.0 + 0.1 * jax.random.normal(k4, (Ctot,), jnp.float32)
    beta = 0.1 * jax.random.normal(k5, (Ctot,), jnp.float32)

    y_ref = reference_forward(x, w_cat, bias, gamma, beta)

    # f32 MXU path (tight check); block_m=256 exercises the multi-tile grid.
    y = decoder_block_forward(x, w_cat, bias, gamma, beta,
                              block_m=256, matmul_dtype=jnp.float32)
    y = jax.block_until_ready(y)
    assert y.shape == (N, Ctot, 2 * H, 2 * W), y.shape
    err = float(jnp.max(jnp.abs(y - y_ref)))
    assert err < 2e-3, f"f32 max abs err {err}"

    # bf16 matmul-input path (recommended on v6e/v7x; f32 accumulate/epilogue).
    y_bf = decoder_block_forward(x, w_cat, bias, gamma, beta,
                                 block_m=256, matmul_dtype=jnp.bfloat16)
    y_bf = jax.block_until_ready(y_bf)
    err_bf = float(jnp.max(jnp.abs(y_bf - y_ref)))
    assert err_bf < 0.2, f"bf16 max abs err {err_bf}"

    print("KERNEL_OK")
</pallas_src>

<mosaic_0001>
module attributes {stable_mosaic.version = 11 : i64} {
  func.func @_stats_kernel(%arg0: i32, %arg1: memref<256x32xf32, #tpu.memory_space<vmem>>, %arg2: memref<32x128xf32, #tpu.memory_space<vmem>>, %arg3: memref<1x128xf32, #tpu.memory_space<vmem>>, %arg4: memref<1x128xf32, #tpu.memory_space<vmem>>) attributes {dimension_semantics = [#tpu.dimension_semantics<arbitrary>], iteration_bounds = array<i64: 2>, scalar_prefetch = 0 : i64, scratch_operands = 0 : i64, tpu.core_type = #tpu.core_type<tc>, window_params = [{transform_indices = @transform_0, window_bounds = array<i64: 256, 32>}, {pipeline_mode = #tpu.pipeline_mode<synchronous>, transform_indices = @transform_1, window_bounds = array<i64: 32, 128>}, {pipeline_mode = #tpu.pipeline_mode<synchronous>, transform_indices = @transform_2, window_bounds = array<i64: 1, 128>}, {pipeline_mode = #tpu.pipeline_mode<synchronous>, transform_indices = @transform_3, window_bounds = array<i64: 1, 128>}]} {
    %c0_i32 = arith.constant 0 : i32
    %0 = arith.cmpi eq, %arg0, %c0_i32 : i32
    %1 = arith.extui %0 : i1 to i32
    %c0_i32_0 = arith.constant 0 : i32
    %2 = arith.cmpi ne, %1, %c0_i32_0 : i32
    scf.if %2 {
      %cst_14 = arith.constant 0.000000e+00 : f32
      %17 = vector.broadcast %cst_14 : f32 to vector<1x128xf32>
      %c0_15 = arith.constant 0 : index
      %c0_16 = arith.constant 0 : index
      %18 = vector.load %arg3[%c0_15, %c0_16] : memref<1x128xf32, #tpu.memory_space<vmem>>, vector<1x128xf32>
      tpu.vector_store %arg3[%c0_15, %c0_16], %17 {strides = array<i32>} : memref<1x128xf32, #tpu.memory_space<vmem>>, vector<1x128xf32>,
      %cst_17 = arith.constant 0.000000e+00 : f32
      %19 = vector.broadcast %cst_17 : f32 to vector<1x128xf32>
      %c0_18 = arith.constant 0 : index
      %c0_19 = arith.constant 0 : index
      %20 = vector.load %arg4[%c0_18, %c0_19] : memref<1x128xf32, #tpu.memory_space<vmem>>, vector<1x128xf32>
      tpu.vector_store %arg4[%c0_18, %c0_19], %19 {strides = array<i32>} : memref<1x128xf32, #tpu.memory_space<vmem>>, vector<1x128xf32>,
    } else {
    }
    %c0 = arith.constant 0 : index
    %c0_1 = arith.constant 0 : index
    %3 = vector.load %arg1[%c0, %c0_1] : memref<256x32xf32, #tpu.memory_space<vmem>>, vector<256x32xf32>
    %c0_2 = arith.constant 0 : index
    %c0_3 = arith.constant 0 : index
    %4 = vector.load %arg2[%c0_2, %c0_3] : memref<32x128xf32, #tpu.memory_space<vmem>>, vector<32x128xf32>
    %cst = arith.constant dense<0.000000e+00> : vector<256x128xf32>
    %5 = tpu.matmul %3, %4, %cst {dimension_numbers = #tpu.dot_dimension_numbers<[1], [0], [0], [1], [0, 0, 1, 1], [], []>} : vector<256x32xf32>, vector<32x128xf32>, vector<256x128xf32> -> vector<256x128xf32>
    %c0_4 = arith.constant 0 : index
    %c0_5 = arith.constant 0 : index
    %6 = vector.load %arg3[%c0_4, %c0_5] : memref<1x128xf32, #tpu.memory_space<vmem>>, vector<1x128xf32>
    %cst_6 = arith.constant dense<0.000000e+00> : vector<128xf32>
    %7 = vector.multi_reduction <add>, %5, %cst_6 [0] : vector<256x128xf32> to vector<128xf32>
    %8 = vector.shape_cast %7 : vector<128xf32> to vector<1x128xf32>
    %9 = arith.addf %6, %8 : vector<1x128xf32>
    %c0_7 = arith.constant 0 : index
    %c0_8 = arith.constant 0 : index
    %10 = vector.load %arg3[%c0_7, %c0_8] : memref<1x128xf32, #tpu.memory_space<vmem>>, vector<1x128xf32>
    tpu.vector_store %arg3[%c0_7, %c0_8], %9 {strides = array<i32>} : memref<1x128xf32, #tpu.memory_space<vmem>>, vector<1x128xf32>,
    %c0_9 = arith.constant 0 : index
    %c0_10 = arith.constant 0 : index
    %11 = vector.load %arg4[%c0_9, %c0_10] : memref<1x128xf32, #tpu.memory_space<vmem>>, vector<1x128xf32>
    %12 = arith.mulf %5, %5 : vector<256x128xf32>
    %cst_11 = arith.constant dense<0.000000e+00> : vector<128xf32>
    %13 = vector.multi_reduction <add>, %12, %cst_11 [0] : vector<256x128xf32> to vector<128xf32>
    %14 = vector.shape_cast %13 : vector<128xf32> to vector<1x128xf32>
    %15 = arith.addf %11, %14 : vector<1x128xf32>
    %c0_12 = arith.constant 0 : index
    %c0_13 = arith.constant 0 : index
    %16 = vector.load %arg4[%c0_12, %c0_13] : memref<1x128xf32, #tpu.memory_space<vmem>>, vector<1x128xf32>
    tpu.vector_store %arg4[%c0_12, %c0_13], %15 {strides = array<i32>} : memref<1x128xf32, #tpu.memory_space<vmem>>, vector<1x128xf32>,
    return
  }
  func.func @transform_0(%arg0: i32) -> (i32, i32) {
    %c0_i32 = arith.constant 0 : i32
    %c0_i32_0 = arith.constant 0 : i32
    return %arg0, %c0_i32 : i32, i32
  }
  func.func @transform_1(%arg0: i32) -> (i32, i32) {
    %c0_i32 = arith.constant 0 : i32
    %c0_i32_0 = arith.constant 0 : i32
    %c0_i32_1 = arith.constant 0 : i32
    return %c0_i32, %c0_i32_0 : i32, i32
  }
  func.func @transform_2(%arg0: i32) -> (i32, i32) {
    %c0_i32 = arith.constant 0 : i32
    %c0_i32_0 = arith.constant 0 : i32
    %c0_i32_1 = arith.constant 0 : i32
    return %c0_i32, %c0_i32_0 : i32, i32
  }
  func.func @transform_3(%arg0: i32) -> (i32, i32) {
    %c0_i32 = arith.constant 0 : i32
    %c0_i32_0 = arith.constant 0 : i32
    %c0_i32_1 = arith.constant 0 : i32
    return %c0_i32, %c0_i32_0 : i32, i32
  }
}

</mosaic_0001>

<llo_original>
// kernel: tpu_custom_call.1
$region0: #{tpu_custom_call.1}
  #allocation0 [shape = 'u32[]', space=smem, size = 0x4, offset = 0x4, fixed_abs, tag = 'smem constant byte address 0x4 - core index']
  #allocation1 [shape = 'u32[72,128]{1,0:T(1,128)}', space=vmem, size = 0x9000, scoped, tag = 'internal scratch']
  %s0 = inlined_call_operand.vmem [shape: f32[512,32], index: 0, kind: input, shape index: {}]
  %s1 = inlined_call_operand.vmem [shape: f32[32,128], index: 1, kind: input, shape index: {}]
  %s2 = inlined_call_operand.hbm [shape: f32[1,128], index: 2, kind: output, shape index: {0}]
  %s3 = inlined_call_operand.hbm [shape: f32[1,128], index: 3, kind: output, shape index: {1}]
  %4 = xla_tuple %s2, %s3
  %s5 = sld [smem:[#allocation0]]
  $region53: #{tpu_custom_call.1} parent=0
    _
  %s7 = ssub.s32 1, %s5
  %s8 = scalar_select 0, %s7, %s5
  $region1: #{tpu_custom_call.1} parent=0
    #allocation2 [shape = 'u8[512]{0}', space=vmem, size = 0x400, scoped, tag = 'output window, operand 0, single buffered']
    #allocation3 [shape = 's32[2]{0}', space=sflag, size = 0x8, scoped, tag = 'scoped memory for tpu_custom_call.1']
    #allocation4 [shape = 'u8[512]{0}', space=vmem, size = 0x400, scoped, tag = 'output window, operand 1, single buffered']
    #allocation5 [shape = 's32[1]{0}', space=sflag, size = 0x4, scoped, tag = 'scoped memory for tpu_custom_call.1']
    %9 = vsyncpa [#allocation3], 0
    %10 = vsyncpa [#allocation5], 0
    loop: start=0, step=1, limit=4
    $region2: #{tpu_custom_call.1} parent=1 // loop_pre_header
      _
    $region3: #{tpu_custom_call.1} parent=1 // loop_header
      %s12 = sphi 0, %s16
      %p13 = scmp.ge.s32.totalorder %s12, 4
      %s22 = sphi 0, %s24
      %s25 = sphi 0, %s22
      %s26 = sphi 0, %s25
      %s42 = sphi 0, %s26
      %s46 = sphi 0, %s46
      %s48 = sphi 0, %s46
      %s49 = sphi 0, %s48
      %s63 = sphi 0, %s49
      %s67 = sphi 0, %s67
      %s69 = sphi 0, %s67
      %s70 = sphi 0, %s69
      %s84 = sphi 0, %s70
      %s88 = sphi 0, %s88
      %s90 = sphi 0, %s88
      %s91 = sphi 0, %s90
      %s105 = sphi 0, %s91
    $region4: #{tpu_custom_call.1} parent=1 // loop_header_branch
      %15 = sbr.rel (%p13) target = $region8
    $region5: #{tpu_custom_call.1} parent=1 // loop_body
      %s17 = ssub.s32 %s12, 1
      %s18 = ssub.s32 %s12, 2
      %s19 = sadd.s32 %s12, 1
      %s20 = ssub.s32 %s12, %s19
      %p21 = scmp.eq.s32.totalorder %s20, 0
      %s23 = sadd.s32 %s22, 1
      %s24 = scalar_select %p21, %s22, %s23
      %p27 = pneg %p21
      %p28 = scmp.eq.s32.totalorder %s12, 1
      %p29 = por %p27, %p28
      %p30 = scmp.ne.s32.totalorder %s22, %s25
      %p31 = scmp.eq.s32.totalorder %s12, 0
      %p32 = por %p30, %p31
      %p33 = scmp.ne.s32.totalorder %s22, %s25
      %p34 = scmp.eq.s32.totalorder %s17, 1
      %p35 = por %p33, %p34
      %p36 = scmp.ne.s32.totalorder %s25, %s26
      %p37 = scmp.eq.s32.totalorder %s17, 0
      %p38 = por %p36, %p37
      %p39 = scmp.ne.s32.totalorder %s25, %s26
      %p40 = scmp.eq.s32.totalorder %s18, 1
      %p41 = por %p39, %p40
      %p43 = scmp.ne.s32.totalorder %s26, %s42
      %p44 = scmp.eq.s32.totalorder %s18, 0
      %p45 = por %p43, %p44
      %s47 = sadd.s32 %s46, 1
      %p50 = scmp.eq.s32.totalorder %s12, 1
      %p51 = scmp.ne.s32.totalorder %s46, %s48
      %p52 = scmp.eq.s32.totalorder %s12, 0
      %p53 = por %p51, %p52
      %p54 = scmp.ne.s32.totalorder %s46, %s48
      %p55 = scmp.eq.s32.totalorder %s17, 1
      %p56 = por %p54, %p55
      %p57 = scmp.ne.s32.totalorder %s48, %s49
      %p58 = scmp.eq.s32.totalorder %s17, 0
      %p59 = por %p57, %p58
      %p60 = scmp.ne.s32.totalorder %s48, %s49
      %p61 = scmp.eq.s32.totalorder %s18, 1
      %p62 = por %p60, %p61
      %p64 = scmp.ne.s32.totalorder %s49, %s63
      %p65 = scmp.eq.s32.totalorder %s18, 0
      %p66 = por %p64, %p65
      %s68 = sadd.s32 %s67, 1
      %p71 = scmp.eq.s32.totalorder %s12, 1
      %p72 = scmp.ne.s32.totalorder %s67, %s69
      %p73 = scmp.eq.s32.totalorder %s12, 0
      %p74 = por %p72, %p73
      %p75 = scmp.ne.s32.totalorder %s67, %s69
      %p76 = scmp.eq.s32.totalorder %s17, 1
      %p77 = por %p75, %p76
      %p78 = scmp.ne.s32.totalorder %s69, %s70
      %p79 = scmp.eq.s32.totalorder %s17, 0
      %p80 = por %p78, %p79
      %p81 = scmp.ne.s32.totalorder %s69, %s70
      %p82 = scmp.eq.s32.totalorder %s18, 1
      %p83 = por %p81, %p82
      %p85 = scmp.ne.s32.totalorder %s70, %s84
      %p86 = scmp.eq.s32.totalorder %s18, 0
      %p87 = por %p85, %p86
      %s89 = sadd.s32 %s88, 1
      %p92 = scmp.eq.s32.totalorder %s12, 1
      %p93 = scmp.ne.s32.totalorder %s88, %s90
      %p94 = scmp.eq.s32.totalorder %s12, 0
      %p95 = por %p93, %p94
      %p96 = scmp.ne.s32.totalorder %s88, %s90
      %p97 = scmp.eq.s32.totalorder %s17, 1
      %p98 = por %p96, %p97
      %p99 = scmp.ne.s32.totalorder %s90, %s91
      %p100 = scmp.eq.s32.totalorder %s17, 0
      %p101 = por %p99, %p100
      %p102 = scmp.ne.s32.totalorder %s90, %s91
      %p103 = scmp.eq.s32.totalorder %s18, 1
      %p104 = por %p102, %p103
      %p106 = scmp.ne.s32.totalorder %s91, %s105
      %p107 = scmp.eq.s32.totalorder %s18, 0
      %p108 = por %p106, %p107
      %p109 = scmp.le.s32.totalorder 1, %s12
      %p110 = scmp.lt.s32.totalorder %s12, 3
      %p111 = pnand %p109, %p110
      %p112 = pneg %p111
      // Predicated region
      $region9: #{tpu_custom_call.1} parent=5 // pred_check
        _
      $region10: #{tpu_custom_call.1} parent=5 // pred_check_branch
        %114 = sbr.rel (%p111) target = $region12
      $region11: #{tpu_custom_call.1} parent=5 // pred_region
        %s115 = ssub.s32 %s12, 1
        // Predicated region
        $region13: #{tpu_custom_call.1} parent=11 // pred_check
          %p116 = pneg %p59
        $region14: #{tpu_custom_call.1} parent=11 // pred_check_branch
          %118 = sbr.rel (%p116) target = $region16
        $region15: #{tpu_custom_call.1} parent=11 // pred_region
          _
        $region16: #{tpu_custom_call.1} parent=11 // pred_fallthru
          _
      $region12: #{tpu_custom_call.1} parent=5 // pred_fallthru
        _
      %p119 = scmp.lt.s32.totalorder %s12, 2
      // Predicated region
      $region17: #{tpu_custom_call.1} parent=5 // pred_check
        %p120 = pneg %p119
      $region18: #{tpu_custom_call.1} parent=5 // pred_check_branch
        %122 = sbr.rel (%p120) target = $region20
      $region19: #{tpu_custom_call.1} parent=5 // pred_region
        // Predicated region
        $region21: #{tpu_custom_call.1} parent=19 // pred_check
          %p123 = pneg %p32
        $region22: #{tpu_custom_call.1} parent=19 // pred_check_branch
          %125 = sbr.rel (%p123) target = $region24
        $region23: #{tpu_custom_call.1} parent=19 // pred_region
          %s126 = smul.u32 32, %s12
          %p127 = scmp.lt.s32.totalorder %s126, 63
          %s128 = scalar_select %p127, %s126, 63
          %s129 = smul.addr %s128, 8
          %s130 = scalar_lea.vmem %s0, %s129
          %s131 = smul.u32 32, %s12
        $region24: #{tpu_custom_call.1} parent=19 // pred_fallthru
          _
      $region20: #{tpu_custom_call.1} parent=5 // pred_fallthru
        _
      %p132 = scmp.le.s32.totalorder 1, %s12
      %p133 = scmp.lt.s32.totalorder %s12, 3
      %p134 = pnand %p132, %p133
      %p135 = pneg %p134
      // Predicated region
      $region25: #{tpu_custom_call.1} parent=5 // pred_check
        _
      $region26: #{tpu_custom_call.1} parent=5 // pred_check_branch
        %137 = sbr.rel (%p134) target = $region28
      $region27: #{tpu_custom_call.1} parent=5 // pred_region
        %s138 = ssub.s32 %s12, 1
        %s139 = smul.u32 32, %s17
        %p140 = scmp.lt.s32.totalorder %s139, 63
        %s141 = scalar_select %p140, %s139, 63
        %s142 = smul.addr %s141, 8
        %s143 = scalar_lea.vmem %s0, %s142
        %p144 = pneg %p38
        %p145 = pneg %p35
        %p146 = pneg %p59
        %p147 = pneg %p56
        %p148 = pneg %p80
        %p149 = pneg %p77
        %p150 = pneg %p101
        %p151 = pneg %p98
        %s152 = smul.u32 32, %s17
        %p153 = scmp.lt.s32.totalorder %s152, 63
        %s154 = scalar_select %p153, %s152, 63
        %s155 = smul.addr %s154, 8
        %s156 = scalar_lea.vmem %s0, %s155
        %s157 = smul.u32 32, %s17
        %p158 = scmp.eq.s32.totalorder %s17, 0
        // Predicated region
        $region29: #{tpu_custom_call.1} parent=27 // pred_check
          %p159 = pneg %p158
        $region30: #{tpu_custom_call.1} parent=27 // pred_check_branch
          %161 = sbr.rel (%p159) target = $region32
        $region31: #{tpu_custom_call.1} parent=27 // pred_region
          %162 = vst [vmem:[#allocation2] sm:$0x1] 0.0
          %163 = vst [vmem:[#allocation4] sm:$0x1] 0.0
        $region32: #{tpu_custom_call.1} parent=27 // pred_fallthru
          _
        %v164 = vld [vmem:[%s156] sm:$0xff]
        %v165 = vld [vmem:[%s156 + $0x8] sm:$0xff]
        %v166 = vld [vmem:[%s156 + $0x10] sm:$0xff]
        %v167 = vld [vmem:[%s156 + $0x18] sm:$0xff]
        %v168 = vld [vmem:[%s156 + $0x20] sm:$0xff]
        %v169 = vld [vmem:[%s156 + $0x28] sm:$0xff]
        %v170 = vld [vmem:[%s156 + $0x30] sm:$0xff]
        %v171 = vld [vmem:[%s156 + $0x38] sm:$0xff]
        %v172 = vld [vmem:[%s156 + $0x40] sm:$0xff]
        %v173 = vld [vmem:[%s156 + $0x48] sm:$0xff]
        %v174 = vld [vmem:[%s156 + $0x50] sm:$0xff]
        %v175 = vld [vmem:[%s156 + $0x58] sm:$0xff]
        %v176 = vld [vmem:[%s156 + $0x60] sm:$0xff]
        %v177 = vld [vmem:[%s156 + $0x68] sm:$0xff]
        %v178 = vld [vmem:[%s156 + $0x70] sm:$0xff]
        %v179 = vld [vmem:[%s156 + $0x78] sm:$0xff]
        %v180 = vld [vmem:[%s156 + $0x80] sm:$0xff]
        %v181 = vld [vmem:[%s156 + $0x88] sm:$0xff]
        %v182 = vld [vmem:[%s156 + $0x90] sm:$0xff]
        %v183 = vld [vmem:[%s156 + $0x98] sm:$0xff]
        %v184 = vld [vmem:[%s156 + $0xa0] sm:$0xff]
        %v185 = vld [vmem:[%s156 + $0xa8] sm:$0xff]
        %v186 = vld [vmem:[%s156 + $0xb0] sm:$0xff]
        %v187 = vld [vmem:[%s156 + $0xb8] sm:$0xff]
        %v188 = vld [vmem:[%s156 + $0xc0] sm:$0xff]
        %v189 = vld [vmem:[%s156 + $0xc8] sm:$0xff]
        %v190 = vld [vmem:[%s156 + $0xd0] sm:$0xff]
        %v191 = vld [vmem:[%s156 + $0xd8] sm:$0xff]
        %v192 = vld [vmem:[%s156 + $0xe0] sm:$0xff]
        %v193 = vld [vmem:[%s156 + $0xe8] sm:$0xff]
        %v194 = vld [vmem:[%s156 + $0xf0] sm:$0xff]
        %v195 = vld [vmem:[%s156 + $0xf8] sm:$0xff]
        %v196 = vld [vmem:[%s1] sm:$0xff]
        %v197 = vld [vmem:[%s1 + $0x8] sm:$0xff]
        %v198 = vld [vmem:[%s1 + $0x10] sm:$0xff]
        %v199 = vld [vmem:[%s1 + $0x18] sm:$0xff]
        %vm200 = vcmask 261120
        %v202 = vsel %vm200, %v164, 0
        %v205 = vsel %vm200, %v165, 0
        %v208 = vsel %vm200, %v166, 0
        %v211 = vsel %vm200, %v167, 0
        %v214 = vsel %vm200, %v168, 0
        %v217 = vsel %vm200, %v169, 0
        %v220 = vsel %vm200, %v170, 0
        %v223 = vsel %vm200, %v171, 0
        %v226 = vsel %vm200, %v172, 0
        %v229 = vsel %vm200, %v173, 0
        %v232 = vsel %vm200, %v174, 0
        %v235 = vsel %vm200, %v175, 0
        %v238 = vsel %vm200, %v176, 0
        %v241 = vsel %vm200, %v177, 0
        %v244 = vsel %vm200, %v178, 0
        %v247 = vsel %vm200, %v179, 0
        %v250 = vsel %vm200, %v180, 0
        %v253 = vsel %vm200, %v181, 0
        %v256 = vsel %vm200, %v182, 0
        %v259 = vsel %vm200, %v183, 0
        %v262 = vsel %vm200, %v184, 0
        %v265 = vsel %vm200, %v185, 0
        %v268 = vsel %vm200, %v186, 0
        %v271 = vsel %vm200, %v187, 0
        %v274 = vsel %vm200, %v188, 0
        %v277 = vsel %vm200, %v189, 0
        %v280 = vsel %vm200, %v190, 0
        %v283 = vsel %vm200, %v191, 0
        %v286 = vsel %vm200, %v192, 0
        %v289 = vsel %vm200, %v193, 0
        %v292 = vsel %vm200, %v194, 0
        %v295 = vsel %vm200, %v195, 0
        %297 = vmatpush.msra.mxu0 0.0
        %298 = vmatpush.msra.mxu0 0.0
        %299 = vmatpush.msra.mxu0 0.0
        %300 = vmatpush.msra.mxu0 0.0
        %301 = vmatpush.msra.mxu0 0.0
        %302 = vmatpush.msra.mxu0 0.0
        %303 = vmatpush.msra.mxu0 0.0
        %304 = vmatpush.msra.mxu0 0.0
        %305 = vmatpush.msra.mxu0 0.0
        %306 = vmatpush.msra.mxu0 0.0
        %307 = vmatpush.msra.mxu0 0.0
        %308 = vmatpush.msra.mxu0 0.0
        %309 = vmatpush.msra.mxu0 %v199
        %310 = vmatpush.msra.mxu0 %v198
        %311 = vmatpush.msra.mxu0 %v197
        %312 = vmatpush.msra.mxu0 %v196
        %313 = vmatmul.f32.gmra.mxu0 %v202
        %v314 = vpop.f32.mrf.mxu0
        %v315 = vadd.f32 0.0, %v314
        %316 = vmatmul.f32.gmra.mxu0 %v205
        %v317 = vpop.f32.mrf.mxu0
        %v318 = vadd.f32 0.0, %v317
        %319 = vmatmul.f32.gmra.mxu0 %v208
        %v320 = vpop.f32.mrf.mxu0
        %v321 = vadd.f32 0.0, %v320
        %322 = vmatmul.f32.gmra.mxu0 %v211
        %v323 = vpop.f32.mrf.mxu0
        %v324 = vadd.f32 0.0, %v323
        %325 = vmatmul.f32.gmra.mxu0 %v214
        %v326 = vpop.f32.mrf.mxu0
        %v327 = vadd.f32 0.0, %v326
        %328 = vmatmul.f32.gmra.mxu0 %v217
        %v329 = vpop.f32.mrf.mxu0
        %v330 = vadd.f32 0.0, %v329
        %331 = vmatmul.f32.gmra.mxu0 %v220
        %v332 = vpop.f32.mrf.mxu0
        %v333 = vadd.f32 0.0, %v332
        %334 = vmatmul.f32.gmra.mxu0 %v223
        %v335 = vpop.f32.mrf.mxu0
        %v336 = vadd.f32 0.0, %v335
        %337 = vmatmul.f32.gmra.mxu0 %v226
        %v338 = vpop.f32.mrf.mxu0
        %v339 = vadd.f32 0.0, %v338
        %340 = vmatmul.f32.gmra.mxu0 %v229
        %v341 = vpop.f32.mrf.mxu0
        %v342 = vadd.f32 0.0, %v341
        %343 = vmatmul.f32.gmra.mxu0 %v232
        %v344 = vpop.f32.mrf.mxu0
        %v345 = vadd.f32 0.0, %v344
        %346 = vmatmul.f32.gmra.mxu0 %v235
        %v347 = vpop.f32.mrf.mxu0
        %v348 = vadd.f32 0.0, %v347
        %349 = vmatmul.f32.gmra.mxu0 %v238
        %v350 = vpop.f32.mrf.mxu0
        %v351 = vadd.f32 0.0, %v350
        %352 = vmatmul.f32.gmra.mxu0 %v241
        %v353 = vpop.f32.mrf.mxu0
        %v354 = vadd.f32 0.0, %v353
        %355 = vmatmul.f32.gmra.mxu0 %v244
        %v356 = vpop.f32.mrf.mxu0
        %v357 = vadd.f32 0.0, %v356
        %358 = vmatmul.f32.gmra.mxu0 %v247
        %v359 = vpop.f32.mrf.mxu0
        %v360 = vadd.f32 0.0, %v359
        %361 = vmatmul.f32.gmra.mxu0 %v250
        %v362 = vpop.f32.mrf.mxu0
        %v363 = vadd.f32 0.0, %v362
        %364 = vmatmul.f32.gmra.mxu0 %v253
        %v365 = vpop.f32.mrf.mxu0
        %v366 = vadd.f32 0.0, %v365
        %367 = vmatmul.f32.gmra.mxu0 %v256
        %v368 = vpop.f32.mrf.mxu0
        %v369 = vadd.f32 0.0, %v368
        %370 = vmatmul.f32.gmra.mxu0 %v259
        %v371 = vpop.f32.mrf.mxu0
        %v372 = vadd.f32 0.0, %v371
        %373 = vmatmul.f32.gmra.mxu0 %v262
        %v374 = vpop.f32.mrf.mxu0
        %v375 = vadd.f32 0.0, %v374
        %376 = vmatmul.f32.gmra.mxu0 %v265
        %v377 = vpop.f32.mrf.mxu0
        %v378 = vadd.f32 0.0, %v377
        %379 = vmatmul.f32.gmra.mxu0 %v268
        %v380 = vpop.f32.mrf.mxu0
        %v381 = vadd.f32 0.0, %v380
        %382 = vmatmul.f32.gmra.mxu0 %v271
        %v383 = vpop.f32.mrf.mxu0
        %v384 = vadd.f32 0.0, %v383
        %385 = vmatmul.f32.gmra.mxu0 %v274
        %v386 = vpop.f32.mrf.mxu0
        %v387 = vadd.f32 0.0, %v386
        %388 = vmatmul.f32.gmra.mxu0 %v277
        %v389 = vpop.f32.mrf.mxu0
        %v390 = vadd.f32 0.0, %v389
        %391 = vmatmul.f32.gmra.mxu0 %v280
        %v392 = vpop.f32.mrf.mxu0
        %v393 = vadd.f32 0.0, %v392
        %394 = vmatmul.f32.gmra.mxu0 %v283
        %v395 = vpop.f32.mrf.mxu0
        %v396 = vadd.f32 0.0, %v395
        %397 = vmatmul.f32.gmra.mxu0 %v286
        %v398 = vpop.f32.mrf.mxu0
        %v399 = vadd.f32 0.0, %v398
        %400 = vmatmul.f32.gmra.mxu0 %v289
        %v401 = vpop.f32.mrf.mxu0
        %v402 = vadd.f32 0.0, %v401
        %403 = vmatmul.f32.gmra.mxu0 %v292
        %v404 = vpop.f32.mrf.mxu0
        %v405 = vadd.f32 0.0, %v404
        %406 = vmatmul.f32.gmra.mxu0 %v295
        %v407 = vpop.f32.mrf.mxu0
        %v408 = vadd.f32 0.0, %v407
        %409 = vdwg.mxu0
        %v410 = vld [vmem:[#allocation2] sm:$0x1]
        %v411 = vadd.f32 %v315, %v318
        %v412 = vadd.f32 %v411, %v321
        %v413 = vadd.f32 %v412, %v324
        %v414 = vadd.f32 %v413, %v327
        %v415 = vadd.f32 %v414, %v330
        %v416 = vadd.f32 %v415, %v333
        %v417 = vadd.f32 %v416, %v336
        %v418 = vadd.f32 %v417, %v339
        %v419 = vadd.f32 %v418, %v342
        %v420 = vadd.f32 %v419, %v345
        %v421 = vadd.f32 %v420, %v348
        %v422 = vadd.f32 %v421, %v351
        %v423 = vadd.f32 %v422, %v354
        %v424 = vadd.f32 %v423, %v357
        %v425 = vadd.f32 %v424, %v360
        %v426 = vadd.f32 %v425, %v363
        %v427 = vadd.f32 %v426, %v366
        %v428 = vadd.f32 %v427, %v369
        %v429 = vadd.f32 %v428, %v372
        %v430 = vadd.f32 %v429, %v375
        %v431 = vadd.f32 %v430, %v378
        %v432 = vadd.f32 %v431, %v381
        %v433 = vadd.f32 %v432, %v384
        %v434 = vadd.f32 %v433, %v387
        %v435 = vadd.f32 %v434, %v390
        %v436 = vadd.f32 %v435, %v393
        %v437 = vadd.f32 %v436, %v396
        %v438 = vadd.f32 %v437, %v399
        %v439 = vadd.f32 %v438, %v402
        %v440 = vadd.f32 %v439, %v405
        %v441 = vadd.f32 %v440, %v408
        %v442 = vrot.slane %v441, 4
        %v443 = vadd.f32 %v441, %v442
        %v444 = vrot.slane %v443, 2
        %v445 = vadd.f32 %v443, %v444
        %v446 = vrot.slane %v445, 1
        %v447 = vadd.f32 %v445, %v446
        %v448 = vadd.f32 %v410, %v447
        %449 = vst [vmem:[#allocation2] sm:$0x1] %v448
        %v450 = vld [vmem:[#allocation4] sm:$0x1]
        %v451 = vmul.f32 %v315, %v315
        %v452 = vmul.f32 %v318, %v318
        %v453 = vmul.f32 %v321, %v321
        %v454 = vmul.f32 %v324, %v324
        %v455 = vmul.f32 %v327, %v327
        %v456 = vmul.f32 %v330, %v330
        %v457 = vmul.f32 %v333, %v333
        %v458 = vmul.f32 %v336, %v336
        %v459 = vmul.f32 %v339, %v339
        %v460 = vmul.f32 %v342, %v342
        %v461 = vmul.f32 %v345, %v345
        %v462 = vmul.f32 %v348, %v348
        %v463 = vmul.f32 %v351, %v351
        %v464 = vmul.f32 %v354, %v354
        %v465 = vmul.f32 %v357, %v357
        %v466 = vmul.f32 %v360, %v360
        %v467 = vmul.f32 %v363, %v363
        %v468 = vmul.f32 %v366, %v366
        %v469 = vmul.f32 %v369, %v369
        %v470 = vmul.f32 %v372, %v372
        %v471 = vmul.f32 %v375, %v375
        %v472 = vmul.f32 %v378, %v378
        %v473 = vmul.f32 %v381, %v381
        %v474 = vmul.f32 %v384, %v384
        %v475 = vmul.f32 %v387, %v387
        %v476 = vmul.f32 %v390, %v390
        %v477 = vmul.f32 %v393, %v393
        %v478 = vmul.f32 %v396, %v396
        %v479 = vmul.f32 %v399, %v399
        %v480 = vmul.f32 %v402, %v402
        %v481 = vmul.f32 %v405, %v405
        %v482 = vmul.f32 %v408, %v408
        %v483 = vadd.f32 %v451, %v452
        %v484 = vadd.f32 %v483, %v453
        %v485 = vadd.f32 %v484, %v454
        %v486 = vadd.f32 %v485, %v455
        %v487 = vadd.f32 %v486, %v456
        %v488 = vadd.f32 %v487, %v457
        %v489 = vadd.f32 %v488, %v458
        %v490 = vadd.f32 %v489, %v459
        %v491 = vadd.f32 %v490, %v460
        %v492 = vadd.f32 %v491, %v461
        %v493 = vadd.f32 %v492, %v462
        %v494 = vadd.f32 %v493, %v463
        %v495 = vadd.f32 %v494, %v464
        %v496 = vadd.f32 %v495, %v465
        %v497 = vadd.f32 %v496, %v466
        %v498 = vadd.f32 %v497, %v467
        %v499 = vadd.f32 %v498, %v468
        %v500 = vadd.f32 %v499, %v469
        %v501 = vadd.f32 %v500, %v470
        %v502 = vadd.f32 %v501, %v471
        %v503 = vadd.f32 %v502, %v472
        %v504 = vadd.f32 %v503, %v473
        %v505 = vadd.f32 %v504, %v474
        %v506 = vadd.f32 %v505, %v475
        %v507 = vadd.f32 %v506, %v476
        %v508 = vadd.f32 %v507, %v477
        %v509 = vadd.f32 %v508, %v478
        %v510 = vadd.f32 %v509, %v479
        %v511 = vadd.f32 %v510, %v480
        %v512 = vadd.f32 %v511, %v481
        %v513 = vadd.f32 %v512, %v482
        %v514 = vrot.slane %v513, 4
        %v515 = vadd.f32 %v513, %v514
        %v516 = vrot.slane %v515, 2
        %v517 = vadd.f32 %v515, %v516
        %v518 = vrot.slane %v517, 1
        %v519 = vadd.f32 %v517, %v518
        %v520 = vadd.f32 %v450, %v519
        %521 = vst [vmem:[#allocation4] sm:$0x1] %v520
        // Predicated region
        $region33: #{tpu_custom_call.1} parent=27 // pred_check
          %p522 = pneg %p77
        $region34: #{tpu_custom_call.1} parent=27 // pred_check_branch
          %524 = sbr.rel (%p522) target = $region36
        $region35: #{tpu_custom_call.1} parent=27 // pred_region
          %526 = vsyncadd [#allocation3], 0
          %s528 = sshll.u32 [#allocation2], 4
          %s529 = int_to_ptr.vmem [resolvable:$true] %s528
          %s530 = sshll.u32 %s2, 4
          %s531 = int_to_ptr.hbm [resolvable:$true] %s530
          %533 = dma.vmem_to_hbm [thread:$0]  %s529, 16, %s531, [#allocation3]
        $region36: #{tpu_custom_call.1} parent=27 // pred_fallthru
          _
        // Predicated region
        $region37: #{tpu_custom_call.1} parent=27 // pred_check
          %p534 = pneg %p98
        $region38: #{tpu_custom_call.1} parent=27 // pred_check_branch
          %536 = sbr.rel (%p534) target = $region40
        $region39: #{tpu_custom_call.1} parent=27 // pred_region
          %538 = vsyncadd [#allocation5], 0
          %s540 = sshll.u32 [#allocation4], 4
          %s541 = int_to_ptr.vmem [resolvable:$true] %s540
          %s542 = sshll.u32 %s3, 4
          %s543 = int_to_ptr.hbm [resolvable:$true] %s542
          %545 = dma.vmem_to_hbm [thread:$0]  %s541, 16, %s543, [#allocation5]
        $region40: #{tpu_custom_call.1} parent=27 // pred_fallthru
          _
        // Predicated region
        $region41: #{tpu_custom_call.1} parent=27 // pred_check
          %p546 = pneg %p77
        $region42: #{tpu_custom_call.1} parent=27 // pred_check_branch
          %548 = sbr.rel (%p546) target = $region44
        $region43: #{tpu_custom_call.1} parent=27 // pred_region
          %550 = dma.done [#allocation3], 16
        $region44: #{tpu_custom_call.1} parent=27 // pred_fallthru
          _
        // Predicated region
        $region45: #{tpu_custom_call.1} parent=27 // pred_check
          %p551 = pneg %p98
        $region46: #{tpu_custom_call.1} parent=27 // pred_check_branch
          %553 = sbr.rel (%p551) target = $region48
        $region47: #{tpu_custom_call.1} parent=27 // pred_region
          %555 = dma.done [#allocation5], 16
        $region48: #{tpu_custom_call.1} parent=27 // pred_fallthru
          _
      $region28: #{tpu_custom_call.1} parent=5 // pred_fallthru
        _
      %p556 = scmp.le.s32.totalorder 2, %s12
      // Predicated region
      $region49: #{tpu_custom_call.1} parent=5 // pred_check
        %p557 = pneg %p556
      $region50: #{tpu_custom_call.1} parent=5 // pred_check_branch
        %559 = sbr.rel (%p557) target = $region52
      $region51: #{tpu_custom_call.1} parent=5 // pred_region
        %s560 = ssub.s32 %s12, 2
      $region52: #{tpu_custom_call.1} parent=5 // pred_fallthru
        _
    $region6: #{tpu_custom_call.1} parent=1 // loop_footer
      %s16 = sadd.s32 1, %s12
    $region7: #{tpu_custom_call.1} parent=1 // loop_footer_branch
      %11 = sbr.rel target = $region3
    $region8: #{tpu_custom_call.1} parent=1 // loop_exit
      _
    %561 = vsyncpa [#allocation3], 1
    %s562 = scalar_lea.sflag [#allocation3], 1
    %563 = vsyncpa %s562, 1
    %564 = vsyncpa [#allocation5], 1

</llo_original>
